<compile_context>
chip_gen: v6e
topology: v6e:2x2x1
jax: 0.10.0
libtpu: 0.0.40
codegen_flags: <defaults>
</compile_context>

<pallas_src>
import functools

import jax
import jax.numpy as jnp
from jax.experimental import pallas as pl
from jax.experimental.pallas import tpu as pltpu

LANES = 128
# 2048 rows x 128 lanes x 4 B = 1 MiB per block; with double-buffered in+out
# that is ~4 MiB of VMEM -> comfortably inside v5e/v6e (16/32 MiB scoped) and
# v7x (64 MiB physical) limits.
DEFAULT_TILE_ROWS = 2048


def _dropout_train_kernel(bits_ref, o_ref, *, thr: int, sq_inv_p: float):
    """Integer-threshold Bernoulli mask, squared: 0 or (1/p)^2."""
    # top 24 random bits compared against round(p * 2^24)  <=>  uniform < p
    r = (bits_ref[...] >> 8).astype(jnp.int32)
    o_ref[...] = jnp.where(r < jnp.int32(thr),
                           jnp.float32(sq_inv_p),
                           jnp.float32(0.0))


def _dropout_eval_kernel(x_ref, o_ref, *, p: float):
    # dtype-preserving: cast the scalar, not the tensor.
    o_ref[...] = x_ref[...] * jnp.asarray(p, dtype=o_ref.dtype)


def _tiling(n: int):
    """Pick (rows_padded, tile_rows, grid) for a flat element count n."""
    rows = max(1, -(-n // LANES))
    tile_rows = rows if rows <= DEFAULT_TILE_ROWS else DEFAULT_TILE_ROWS
    rows_padded = -(-rows // tile_rows) * tile_rows
    grid = (rows_padded // tile_rows,)
    return rows_padded, tile_rows, grid


def dropout_layer_forward(x, p: float, *, training: bool, seed: int = 0):
    """Pallas implementation of DropoutLayer.forward.

    Args:
      x: float tensor of any shape (NCHW in the reference usage).
      p: drop probability as used by the reference module.
      training: selects the training / eval branch of the reference forward.
      seed: deterministic seed for the training-branch random mask.
    """
    orig_shape = x.shape
    n = x.size
    rows_padded, tile_rows, grid = _tiling(n)

    block = pl.BlockSpec((tile_rows, LANES), lambda i: (i, 0))
    cparams = pltpu.CompilerParams(dimension_semantics=("parallel",))

    if training:
        # TODO(synk): reference builds a float64 numpy mask; we emit float32.
        bits = jax.random.bits(jax.random.PRNGKey(seed),
                               (rows_padded, LANES), dtype=jnp.uint32)
        thr = min(int(round(p * (1 << 24))), 1 << 24)
        out2d = pl.pallas_call(
            functools.partial(_dropout_train_kernel,
                              thr=thr, sq_inv_p=1.0 / (p * p)),
            grid=grid,
            in_specs=[block],
            out_specs=block,
            out_shape=jax.ShapeDtypeStruct((rows_padded, LANES), jnp.float32),
            compiler_params=cparams,
        )(bits)
        return out2d.reshape(-1)[:n].reshape(orig_shape)
    else:
        # TODO(synk): PyTorch's eval branch mutates `input` in place and
        # returns None; here we return the scaled tensor explicitly.
        flat = x.reshape(-1)
        pad = rows_padded * LANES - n
        if pad:
            flat = jnp.pad(flat, (0, pad))
        x2d = flat.reshape(rows_padded, LANES)
        out2d = pl.pallas_call(
            functools.partial(_dropout_eval_kernel, p=p),
            grid=grid,
            in_specs=[block],
            out_specs=block,
            out_shape=jax.ShapeDtypeStruct((rows_padded, LANES), x.dtype),
            compiler_params=cparams,
        )(x2d)
        return out2d.reshape(-1)[:n].reshape(orig_shape)


if __name__ == "__main__":
    key = jax.random.PRNGKey(0)
    x = jax.random.normal(key, (2, 4, 16, 16), dtype=jnp.float32)  # NCHW
    p = 0.5

    # Training branch: squared scaled Bernoulli mask, same shape as input.
    out_train = jax.block_until_ready(
        dropout_layer_forward(x, p, training=True, seed=0))
    assert out_train.shape == x.shape
    vals = jnp.unique(out_train)
    assert bool(jnp.all((vals == 0.0) | (vals == (1.0 / p) ** 2)))

    # Eval branch: input * p, dtype preserved.
    out_eval = jax.block_until_ready(
        dropout_layer_forward(x, p, training=False))
    assert out_eval.shape == x.shape
    assert out_eval.dtype == x.dtype
    assert bool(jnp.allclose(out_eval, x * p, atol=1e-6))

    print("KERNEL_OK")
</pallas_src>

<mosaic_0001>
module attributes {stable_mosaic.version = 11 : i64} {
  func.func @_dropout_train_kernel(%arg0: i32, %arg1: memref<16x128xi32, #tpu.memory_space<vmem>>, %arg2: memref<16x128xf32, #tpu.memory_space<vmem>>) attributes {dimension_semantics = [#tpu.dimension_semantics<parallel>], iteration_bounds = array<i64: 1>, scalar_prefetch = 0 : i64, scratch_operands = 0 : i64, tpu.core_type = #tpu.core_type<tc>, window_params = [{transform_indices = @transform_0, window_bounds = array<i64: 16, 128>}, {transform_indices = @transform_1, window_bounds = array<i64: 16, 128>}]} {
    %c0 = arith.constant 0 : index
    %c0_0 = arith.constant 0 : index
    %0 = vector.load %arg1[%c0, %c0_0] : memref<16x128xi32, #tpu.memory_space<vmem>>, vector<16x128xi32>
    %c8_i32 = arith.constant 8 : i32
    %1 = vector.broadcast %c8_i32 : i32 to vector<16x128xi32>
    %2 = arith.shrui %0, %1 : vector<16x128xi32>
    %c8388608_i32 = arith.constant 8388608 : i32
    %3 = vector.broadcast %c8388608_i32 : i32 to vector<16x128xi32>
    %4 = arith.cmpi slt, %2, %3 : vector<16x128xi32>
    %cst = arith.constant 4.000000e+00 : f32
    %cst_1 = arith.constant 0.000000e+00 : f32
    %5 = vector.broadcast %cst : f32 to vector<16x128xf32>
    %6 = vector.broadcast %cst_1 : f32 to vector<16x128xf32>
    %7 = arith.select %4, %5, %6 : vector<16x128xi1>, vector<16x128xf32>
    %c0_2 = arith.constant 0 : index
    %c0_3 = arith.constant 0 : index
    %8 = vector.load %arg2[%c0_2, %c0_3] : memref<16x128xf32, #tpu.memory_space<vmem>>, vector<16x128xf32>
    tpu.vector_store %arg2[%c0_2, %c0_3], %7 {strides = array<i32>} : memref<16x128xf32, #tpu.memory_space<vmem>>, vector<16x128xf32>,
    return
  }
  func.func @transform_0(%arg0: i32) -> (i32, i32) {
    %c0_i32 = arith.constant 0 : i32
    %c0_i32_0 = arith.constant 0 : i32
    return %arg0, %c0_i32 : i32, i32
  }
  func.func @transform_1(%arg0: i32) -> (i32, i32) {
    %c0_i32 = arith.constant 0 : i32
    %c0_i32_0 = arith.constant 0 : i32
    return %arg0, %c0_i32 : i32, i32
  }
}

</mosaic_0001>

<llo_original>
// kernel: tpu_custom_call.1
$region0: #{tpu_custom_call.1}
  #allocation0 [shape = 'u32[]', space=smem, size = 0x4, offset = 0x4, fixed_abs, tag = 'smem constant byte address 0x4 - core index']
  #allocation1 [shape = 'u32[144,128]{1,0:T(1,128)}', space=vmem, size = 0x12000, scoped, tag = 'internal scratch']
  %s0 = inlined_call_operand.hbm [shape: u32[16,128], index: 0, kind: input, shape index: {}]
  %s1 = inlined_call_operand.hbm [shape: f32[16,128], index: 1, kind: output, shape index: {}]
  %s2 = sld [smem:[#allocation0]]
  $region18: #{tpu_custom_call.1} parent=0
    _
  %s4 = ssub.s32 1, %s2
  %s5 = scalar_select 0, %s4, %s2
  $region1: #{tpu_custom_call.1} parent=0
    #allocation2 [shape = 'u8[8192]{0}', space=vmem, size = 0x2000, scoped, tag = 'input window, operand 0, single buffered']
    #allocation3 [shape = 's32[1]{0}', space=sflag, size = 0x4, scoped, tag = 'scoped memory for tpu_custom_call.1']
    #allocation4 [shape = 's32[1]{0}', space=sflag, size = 0x4, scoped, tag = 'scoped memory for tpu_custom_call.1']
    #allocation5 [shape = 'u8[8192]{0}', space=vmem, size = 0x2000, scoped, tag = 'output window, operand 0, single buffered']
    %6 = vsyncpa [#allocation3], 0
    %7 = vsyncpa [#allocation4], 0
    // Predicated region
    $region2: #{tpu_custom_call.1} parent=1 // pred_check
      _
    $region3: #{tpu_custom_call.1} parent=1 // pred_check_branch
      %9 = sbr.rel (0) target = $region5
    $region4: #{tpu_custom_call.1} parent=1 // pred_region
      %s11 = ssub.s32 256, 256
      %12 = vsyncadd [#allocation3], %s11
      %s13 = sshll.u32 [#allocation2], 4
      %s14 = int_to_ptr.vmem [resolvable:$true] %s13
      %19 = dma.hbm_to_vmem [thread:$0]  %s0, 256, %s14, [#allocation3], 128, 128, 8
    $region5: #{tpu_custom_call.1} parent=1 // pred_fallthru
      _
    // Predicated region
    $region6: #{tpu_custom_call.1} parent=1 // pred_check
      _
    $region7: #{tpu_custom_call.1} parent=1 // pred_check_branch
      %21 = sbr.rel (0) target = $region9
    $region8: #{tpu_custom_call.1} parent=1 // pred_region
      %22 = dma.done [#allocation3], 256
    $region9: #{tpu_custom_call.1} parent=1 // pred_fallthru
      _
    %v23 = vld [vmem:[#allocation2] sm:$0xff]
    %v24 = vld [vmem:[#allocation2 + $0x8] sm:$0xff]
    %v25 = vshrl.u32 %v23, 8
    %v26 = vshrl.u32 %v24, 8
    %vm27 = vcmp.lt.s32.totalorder %v25, 8388608
    %vm28 = vcmp.lt.s32.totalorder %v26, 8388608
    %v29 = vsel %vm27, 4.0, 0.0
    %v30 = vsel %vm28, 4.0, 0.0
    %31 = vst [vmem:[#allocation5] sm:$0xff] %v29
    %32 = vst [vmem:[#allocation5 + $0x8] sm:$0xff] %v30
    // Predicated region
    $region10: #{tpu_custom_call.1} parent=1 // pred_check
      _
    $region11: #{tpu_custom_call.1} parent=1 // pred_check_branch
      %34 = sbr.rel (0) target = $region13
    $region12: #{tpu_custom_call.1} parent=1 // pred_region
      %s36 = ssub.s32 256, 256
      %37 = vsyncadd [#allocation4], %s36
      %s38 = sshll.u32 [#allocation5], 4
      %s39 = int_to_ptr.vmem [resolvable:$true] %s38
      %44 = dma.vmem_to_hbm [thread:$0]  %s39, 256, %s1, [#allocation4], 128, 128, 8
    $region13: #{tpu_custom_call.1} parent=1 // pred_fallthru
      _
    // Predicated region
    $region14: #{tpu_custom_call.1} parent=1 // pred_check
      _
    $region15: #{tpu_custom_call.1} parent=1 // pred_check_branch
      %46 = sbr.rel (0) target = $region17
    $region16: #{tpu_custom_call.1} parent=1 // pred_region
      %47 = dma.done [#allocation4], 256
    $region17: #{tpu_custom_call.1} parent=1 // pred_fallthru
      _
    %48 = vsyncpa [#allocation3], 1
    %49 = vsyncpa [#allocation4], 1

</llo_original>
